<compile_context>
chip_gen: v6e
topology: v6e:2x2x1
jax: 0.10.0
libtpu: 0.0.40
codegen_flags: <defaults>
</compile_context>

<pallas_src>
import functools
import math

import jax
import jax.numpy as jnp
from jax.experimental import pallas as pl
from jax.experimental.pallas import tpu as pltpu


def _round_up(n, m):
    return ((n + m - 1) // m) * m


def _choose_tile(batch, tb_max):
    """Balanced, 8-aligned batch tile; even tile count for big B (v7x 2 TCs)."""
    n = max(1, math.ceil(batch / tb_max))
    if batch >= 256:
        n = max(n, 2)
        if n % 2:
            n += 1
    return max(8, _round_up(math.ceil(batch / n), 8))


def net_kernel(x_ref, w1_ref, w2_ref, wh_ref, b1_ref, b2_ref, bh_ref, y_ref):
    """One batch tile: fc1+relu, fc2+relu, fused (a|v) head. MXU matmuls, f32 acc."""
    # x streamed as f32, cast to bf16 in-kernel (cheaper than a wrapper-side pass).
    x = x_ref[...].astype(w1_ref.dtype)                      # (TB, in) bf16

    h1 = jnp.dot(x, w1_ref[...], preferred_element_type=jnp.float32) + b1_ref[...]
    h1 = jnp.maximum(h1, 0.0).astype(w2_ref.dtype)           # (TB, hidden//2)

    h2 = jnp.dot(h1, w2_ref[...], preferred_element_type=jnp.float32) + b2_ref[...]
    h2 = jnp.maximum(h2, 0.0).astype(wh_ref.dtype)           # (TB, hidden)

    # fused head: columns [0:out) = advantage, column out = value, rest zero.
    y_ref[...] = jnp.dot(h2, wh_ref[...], preferred_element_type=jnp.float32) + bh_ref[...]


@functools.partial(jax.jit, static_argnames=("output_size", "tb"))
def net_forward(x, packed, *, output_size, tb=2048):
    """x: (B, input_size) float32. packed: output of pack_params()."""
    B, in_size = x.shape
    w1, w2, wh = packed["w1"], packed["w2"], packed["wh"]
    b1, b2, bh = packed["b1"], packed["b2"], packed["bh"]
    h2_dim, hid_dim = w1.shape[1], w2.shape[1]
    head_pad = wh.shape[1]                                    # round_up(out+1, 8)

    # Balanced batch tiling (no whole-tile padding waste; >=2 tiles for big B).
    tile_b = _choose_tile(B, tb)
    b_pad = _round_up(B, tile_b)
    x_p = x if b_pad == B else jnp.pad(x, ((0, b_pad - B), (0, 0)))

    grid = (b_pad // tile_b,)

    flops = 2 * b_pad * (in_size * h2_dim + h2_dim * hid_dim + hid_dim * head_pad)
    bytes_accessed = (
        b_pad * in_size * 4                                   # x read (f32)
        + (w1.size + w2.size + wh.size) * 2                   # bf16 weights
        + (b1.size + b2.size + bh.size) * 4                   # f32 biases
        + b_pad * head_pad * 4                                # narrow f32 output
    )

    y = pl.pallas_call(
        net_kernel,
        out_shape=jax.ShapeDtypeStruct((b_pad, head_pad), jnp.float32),
        grid=grid,
        in_specs=[
            pl.BlockSpec((tile_b, in_size), lambda i: (i, 0)),  # x: streamed per tile
            pl.BlockSpec(w1.shape, lambda i: (0, 0)),           # weights: resident
            pl.BlockSpec(w2.shape, lambda i: (0, 0)),
            pl.BlockSpec(wh.shape, lambda i: (0, 0)),
            pl.BlockSpec(b1.shape, lambda i: (0, 0)),           # biases: resident,
            pl.BlockSpec(b2.shape, lambda i: (0, 0)),           # pre-shaped (no in-
            pl.BlockSpec(bh.shape, lambda i: (0, 0)),           # kernel slicing)
        ],
        out_specs=pl.BlockSpec((tile_b, head_pad), lambda i: (i, 0)),
        compiler_params=pltpu.CompilerParams(
            dimension_semantics=("parallel",),
            vmem_limit_bytes=32 * 1024 * 1024,
        ),
        cost_estimate=pl.CostEstimate(
            flops=flops, transcendentals=0, bytes_accessed=bytes_accessed),
    )(x_p, w1, w2, wh, b1, b2, bh)

    # Cheap fused f32 epilogue: the global a.mean() couples all rows, so the
    # dueling combine runs over the (B, out+1) head output in the wrapper.
    a = y[:B, :output_size]
    v = y[:B, output_size:output_size + 1]
    return a + v - jnp.mean(a)


def init_params(key, input_size, hidden_size, output_size):
    """Deterministic synthetic init (PyTorch-Linear-like uniform bounds).

    Weights are stored transposed, (in_features, out_features), so y = x @ W + b
    matches PyTorch's y = x @ W.T + b.
    """
    h2 = hidden_size // 2
    ks = jax.random.split(key, 8)

    def lin(kw, kb, fan_in, fan_out):
        bound = 1.0 / jnp.sqrt(fan_in)
        w = jax.random.uniform(kw, (fan_in, fan_out), jnp.float32, -bound, bound)
        b = jax.random.uniform(kb, (1, fan_out), jnp.float32, -bound, bound)
        return w, b

    w1, b1 = lin(ks[0], ks[1], input_size, h2)
    w2, b2 = lin(ks[2], ks[3], h2, hidden_size)
    wa, ba = lin(ks[4], ks[5], hidden_size, output_size)
    wv, bv = lin(ks[6], ks[7], hidden_size, 1)
    return {"w1": w1, "b1": b1, "w2": w2, "b2": b2,
            "wa": wa, "ba": ba, "wv": wv, "bv": bv}


def pack_params(params):
    """Fuse (advantage|value) head, pad only to 8 lanes, cast weights to bf16."""
    w1, b1 = params["w1"], params["b1"]
    w2, b2 = params["w2"], params["b2"]
    wa, ba = params["wa"], params["ba"]
    wv, bv = params["wv"], params["bv"]
    hidden, out_size = w2.shape[1], wa.shape[1]
    head_pad = _round_up(out_size + 1, 8)        # narrow stored head (8 lanes)

    # fused head weight: [ wa | wv | zeros ]  -> (hidden, head_pad)
    wh = jnp.zeros((hidden, head_pad), jnp.float32)
    wh = wh.at[:, :out_size].set(wa).at[:, out_size:out_size + 1].set(wv)
    bh = jnp.zeros((1, head_pad), jnp.float32)
    bh = bh.at[0, :out_size].set(ba[0]).at[0, out_size].set(bv[0, 0])

    return {
        "w1": w1.astype(jnp.bfloat16),
        "w2": w2.astype(jnp.bfloat16),
        "wh": wh.astype(jnp.bfloat16),
        "b1": b1,                                 # f32, (1, hidden//2)
        "b2": b2,                                 # f32, (1, hidden)
        "bh": bh,                                 # f32, (1, head_pad)
    }


def net_forward_ref(x, p):
    """Pure-JAX reference with the same bf16-weight / f32-accumulation precision."""
    bf, f32 = jnp.bfloat16, jnp.float32
    h1 = jnp.maximum(
        jnp.dot(x.astype(bf), p["w1"].astype(bf), preferred_element_type=f32) + p["b1"], 0.0)
    h2 = jnp.maximum(
        jnp.dot(h1.astype(bf), p["w2"].astype(bf), preferred_element_type=f32) + p["b2"], 0.0)
    a = jnp.dot(h2.astype(bf), p["wa"].astype(bf), preferred_element_type=f32) + p["ba"]
    v = jnp.dot(h2.astype(bf), p["wv"].astype(bf), preferred_element_type=f32) + p["bv"]
    return a + v - jnp.mean(a)


if __name__ == "__main__":
    input_size, hidden_size, output_size = 16, 32, 4

    key = jax.random.PRNGKey(0)
    kx, kp, kx2 = jax.random.split(key, 3)
    params = init_params(kp, input_size, hidden_size, output_size)
    packed = pack_params(params)

    # Small single-tile check (batch=2).
    x = jax.random.normal(kx, (2, input_size), jnp.float32)
    out = jax.block_until_ready(net_forward(x, packed, output_size=output_size))
    ref = net_forward_ref(x, params)
    assert out.shape == (2, output_size)
    assert jnp.allclose(out, ref, atol=2e-3, rtol=2e-3), "mismatch vs JAX reference (B=2)"

    # Multi-tile / tail-padding check (exercises the balanced 2-tile path).
    x2 = jax.random.normal(kx2, (300, input_size), jnp.float32)
    out2 = jax.block_until_ready(net_forward(x2, packed, output_size=output_size))
    ref2 = net_forward_ref(x2, params)
    assert out2.shape == (300, output_size)
    assert jnp.allclose(out2, ref2, atol=2e-3, rtol=2e-3), "mismatch vs JAX reference (B=300)"

    print("KERNEL_OK")
</pallas_src>

<mosaic_0001>
module attributes {stable_mosaic.version = 11 : i64} {
  func.func @net_kernel(%arg0: i32, %arg1: memref<8x16xf32, #tpu.memory_space<vmem>>, %arg2: memref<16x16xbf16, #tpu.memory_space<vmem>>, %arg3: memref<16x32xbf16, #tpu.memory_space<vmem>>, %arg4: memref<32x8xbf16, #tpu.memory_space<vmem>>, %arg5: memref<1x16xf32, #tpu.memory_space<vmem>>, %arg6: memref<1x32xf32, #tpu.memory_space<vmem>>, %arg7: memref<1x8xf32, #tpu.memory_space<vmem>>, %arg8: memref<8x8xf32, #tpu.memory_space<vmem>>) attributes {dimension_semantics = [#tpu.dimension_semantics<parallel>], iteration_bounds = array<i64: 1>, scalar_prefetch = 0 : i64, scratch_operands = 0 : i64, tpu.core_type = #tpu.core_type<tc>, window_params = [{transform_indices = @transform_0, window_bounds = array<i64: 8, 16>}, {pipeline_mode = #tpu.pipeline_mode<synchronous>, transform_indices = @transform_1, window_bounds = array<i64: 16, 16>}, {pipeline_mode = #tpu.pipeline_mode<synchronous>, transform_indices = @transform_2, window_bounds = array<i64: 16, 32>}, {pipeline_mode = #tpu.pipeline_mode<synchronous>, transform_indices = @transform_3, window_bounds = array<i64: 32, 8>}, {pipeline_mode = #tpu.pipeline_mode<synchronous>, transform_indices = @transform_4, window_bounds = array<i64: 1, 16>}, {pipeline_mode = #tpu.pipeline_mode<synchronous>, transform_indices = @transform_5, window_bounds = array<i64: 1, 32>}, {pipeline_mode = #tpu.pipeline_mode<synchronous>, transform_indices = @transform_6, window_bounds = array<i64: 1, 8>}, {transform_indices = @transform_7, window_bounds = array<i64: 8, 8>}]} {
    %c0 = arith.constant 0 : index
    %c0_0 = arith.constant 0 : index
    %0 = vector.load %arg1[%c0, %c0_0] : memref<8x16xf32, #tpu.memory_space<vmem>>, vector<8x16xf32>
    %1 = arith.truncf %0 : vector<8x16xf32> to vector<8x16xbf16>
    %c0_1 = arith.constant 0 : index
    %c0_2 = arith.constant 0 : index
    %2 = vector.load %arg2[%c0_1, %c0_2] : memref<16x16xbf16, #tpu.memory_space<vmem>>, vector<16x16xbf16>
    %cst = arith.constant dense<0.000000e+00> : vector<8x16xf32>
    %3 = tpu.matmul %1, %2, %cst {dimension_numbers = #tpu.dot_dimension_numbers<[1], [0], [0], [1], [0, 0, 1, 1], [], []>} : vector<8x16xbf16>, vector<16x16xbf16>, vector<8x16xf32> -> vector<8x16xf32>
    %c0_3 = arith.constant 0 : index
    %c0_4 = arith.constant 0 : index
    %4 = vector.load %arg5[%c0_3, %c0_4] : memref<1x16xf32, #tpu.memory_space<vmem>>, vector<1x16xf32>
    %5 = vector.broadcast %4 : vector<1x16xf32> to vector<8x16xf32>
    %6 = arith.addf %3, %5 : vector<8x16xf32>
    %cst_5 = arith.constant 0.000000e+00 : f32
    %7 = vector.broadcast %cst_5 : f32 to vector<8x16xf32>
    %8 = arith.maximumf %6, %7 : vector<8x16xf32>
    %9 = arith.truncf %8 : vector<8x16xf32> to vector<8x16xbf16>
    %c0_6 = arith.constant 0 : index
    %c0_7 = arith.constant 0 : index
    %10 = vector.load %arg3[%c0_6, %c0_7] : memref<16x32xbf16, #tpu.memory_space<vmem>>, vector<16x32xbf16>
    %cst_8 = arith.constant dense<0.000000e+00> : vector<8x32xf32>
    %11 = tpu.matmul %9, %10, %cst_8 {dimension_numbers = #tpu.dot_dimension_numbers<[1], [0], [0], [1], [0, 0, 1, 1], [], []>} : vector<8x16xbf16>, vector<16x32xbf16>, vector<8x32xf32> -> vector<8x32xf32>
    %c0_9 = arith.constant 0 : index
    %c0_10 = arith.constant 0 : index
    %12 = vector.load %arg6[%c0_9, %c0_10] : memref<1x32xf32, #tpu.memory_space<vmem>>, vector<1x32xf32>
    %13 = vector.broadcast %12 : vector<1x32xf32> to vector<8x32xf32>
    %14 = arith.addf %11, %13 : vector<8x32xf32>
    %cst_11 = arith.constant 0.000000e+00 : f32
    %15 = vector.broadcast %cst_11 : f32 to vector<8x32xf32>
    %16 = arith.maximumf %14, %15 : vector<8x32xf32>
    %17 = arith.truncf %16 : vector<8x32xf32> to vector<8x32xbf16>
    %c0_12 = arith.constant 0 : index
    %c0_13 = arith.constant 0 : index
    %18 = vector.load %arg4[%c0_12, %c0_13] : memref<32x8xbf16, #tpu.memory_space<vmem>>, vector<32x8xbf16>
    %cst_14 = arith.constant dense<0.000000e+00> : vector<8x8xf32>
    %19 = tpu.matmul %17, %18, %cst_14 {dimension_numbers = #tpu.dot_dimension_numbers<[1], [0], [0], [1], [0, 0, 1, 1], [], []>} : vector<8x32xbf16>, vector<32x8xbf16>, vector<8x8xf32> -> vector<8x8xf32>
    %c0_15 = arith.constant 0 : index
    %c0_16 = arith.constant 0 : index
    %20 = vector.load %arg7[%c0_15, %c0_16] : memref<1x8xf32, #tpu.memory_space<vmem>>, vector<1x8xf32>
    %21 = vector.broadcast %20 : vector<1x8xf32> to vector<8x8xf32>
    %22 = arith.addf %19, %21 : vector<8x8xf32>
    %c0_17 = arith.constant 0 : index
    %c0_18 = arith.constant 0 : index
    %23 = vector.load %arg8[%c0_17, %c0_18] : memref<8x8xf32, #tpu.memory_space<vmem>>, vector<8x8xf32>
    tpu.vector_store %arg8[%c0_17, %c0_18], %22 {strides = array<i32>} : memref<8x8xf32, #tpu.memory_space<vmem>>, vector<8x8xf32>,
    return
  }
  func.func @transform_0(%arg0: i32) -> (i32, i32) {
    %c0_i32 = arith.constant 0 : i32
    %c0_i32_0 = arith.constant 0 : i32
    return %arg0, %c0_i32 : i32, i32
  }
  func.func @transform_1(%arg0: i32) -> (i32, i32) {
    %c0_i32 = arith.constant 0 : i32
    %c0_i32_0 = arith.constant 0 : i32
    %c0_i32_1 = arith.constant 0 : i32
    return %c0_i32, %c0_i32_0 : i32, i32
  }
  func.func @transform_2(%arg0: i32) -> (i32, i32) {
    %c0_i32 = arith.constant 0 : i32
    %c0_i32_0 = arith.constant 0 : i32
    %c0_i32_1 = arith.constant 0 : i32
    return %c0_i32, %c0_i32_0 : i32, i32
  }
  func.func @transform_3(%arg0: i32) -> (i32, i32) {
    %c0_i32 = arith.constant 0 : i32
    %c0_i32_0 = arith.constant 0 : i32
    %c0_i32_1 = arith.constant 0 : i32
    return %c0_i32, %c0_i32_0 : i32, i32
  }
  func.func @transform_4(%arg0: i32) -> (i32, i32) {
    %c0_i32 = arith.constant 0 : i32
    %c0_i32_0 = arith.constant 0 : i32
    %c0_i32_1 = arith.constant 0 : i32
    return %c0_i32, %c0_i32_0 : i32, i32
  }
  func.func @transform_5(%arg0: i32) -> (i32, i32) {
    %c0_i32 = arith.constant 0 : i32
    %c0_i32_0 = arith.constant 0 : i32
    %c0_i32_1 = arith.constant 0 : i32
    return %c0_i32, %c0_i32_0 : i32, i32
  }
  func.func @transform_6(%arg0: i32) -> (i32, i32) {
    %c0_i32 = arith.constant 0 : i32
    %c0_i32_0 = arith.constant 0 : i32
    %c0_i32_1 = arith.constant 0 : i32
    return %c0_i32, %c0_i32_0 : i32, i32
  }
  func.func @transform_7(%arg0: i32) -> (i32, i32) {
    %c0_i32 = arith.constant 0 : i32
    %c0_i32_0 = arith.constant 0 : i32
    return %arg0, %c0_i32 : i32, i32
  }
}

</mosaic_0001>

<llo_original>
// kernel: net_forward.1
$region0: #{net_forward.1}
  #allocation0 [shape = 'u32[]', space=smem, size = 0x4, offset = 0x4, fixed_abs, tag = 'smem constant byte address 0x4 - core index']
  #allocation1 [shape = 'u32[144,128]{1,0:T(1,128)}', space=vmem, size = 0x12000, scoped, tag = 'internal scratch']
  %s0 = inlined_call_operand.vmem [shape: f32[8,16], index: 0, kind: input, shape index: {}]
  %s1 = inlined_call_operand.vmem [shape: bf16[16,16], index: 1, kind: input, shape index: {}]
  %s2 = inlined_call_operand.vmem [shape: bf16[16,32], index: 2, kind: input, shape index: {}]
  %s3 = inlined_call_operand.vmem [shape: bf16[32,8], index: 3, kind: input, shape index: {}]
  %s4 = inlined_call_operand.vmem [shape: f32[1,16], index: 4, kind: input, shape index: {}]
  %s5 = inlined_call_operand.vmem [shape: f32[1,32], index: 5, kind: input, shape index: {}]
  %s6 = inlined_call_operand.vmem [shape: f32[1,8], index: 6, kind: input, shape index: {}]
  %s7 = inlined_call_operand.vmem [shape: f32[8,8], index: 7, kind: output, shape index: {}]
  %s8 = sld [smem:[#allocation0]]
  $region38: #{net_forward.1} parent=0
    _
  %s10 = ssub.s32 1, %s8
  %s11 = scalar_select 0, %s10, %s8
  // Predicated region
  $region2: #{net_forward.1} parent=0 // pred_check
    _
  $region3: #{net_forward.1} parent=0 // pred_check_branch
    %13 = sbr.rel (0) target = $region5
  $region4: #{net_forward.1} parent=0 // pred_region
    _
  $region5: #{net_forward.1} parent=0 // pred_fallthru
    _
  // Predicated region
  $region6: #{net_forward.1} parent=0 // pred_check
    _
  $region7: #{net_forward.1} parent=0 // pred_check_branch
    %15 = sbr.rel (0) target = $region9
  $region8: #{net_forward.1} parent=0 // pred_region
    _
  $region9: #{net_forward.1} parent=0 // pred_fallthru
    _
  // Predicated region
  $region10: #{net_forward.1} parent=0 // pred_check
    _
  $region11: #{net_forward.1} parent=0 // pred_check_branch
    %17 = sbr.rel (0) target = $region13
  $region12: #{net_forward.1} parent=0 // pred_region
    _
  $region13: #{net_forward.1} parent=0 // pred_fallthru
    _
  // Predicated region
  $region14: #{net_forward.1} parent=0 // pred_check
    _
  $region15: #{net_forward.1} parent=0 // pred_check_branch
    %19 = sbr.rel (0) target = $region17
  $region16: #{net_forward.1} parent=0 // pred_region
    _
  $region17: #{net_forward.1} parent=0 // pred_fallthru
    _
  // Predicated region
  $region18: #{net_forward.1} parent=0 // pred_check
    _
  $region19: #{net_forward.1} parent=0 // pred_check_branch
    %21 = sbr.rel (0) target = $region21
  $region20: #{net_forward.1} parent=0 // pred_region
    _
  $region21: #{net_forward.1} parent=0 // pred_fallthru
    _
  // Predicated region
  $region22: #{net_forward.1} parent=0 // pred_check
    _
  $region23: #{net_forward.1} parent=0 // pred_check_branch
    %23 = sbr.rel (0) target = $region25
  $region24: #{net_forward.1} parent=0 // pred_region
    _
  $region25: #{net_forward.1} parent=0 // pred_fallthru
    _
  // Predicated region
  $region26: #{net_forward.1} parent=0 // pred_check
    _
  $region27: #{net_forward.1} parent=0 // pred_check_branch
    %25 = sbr.rel (0) target = $region29
  $region28: #{net_forward.1} parent=0 // pred_region
    _
  $region29: #{net_forward.1} parent=0 // pred_fallthru
    _
  %v27 = vld [vmem:[%s0] sm:$0xff]
  %v28 = vpack.c.bf16 %v27, %v27
  %v29 = vld [vmem:[%s1] sm:$0xf]
  %v30 = vld [vmem:[%s1 + $0x4] sm:$0xf]
  %v31 = vld [vmem:[%s4] sm:$0x1]
  %v33 = vlaneseq
  %v34 = vshrl.u32 %v33, 7
  %v35 = vsub.s32 0, %v34
  %v36 = vrot.slane %v31, %v35
  %v40 = vunpack.c.l.b16 %v29
  %v41 = vunpack.c.l.b16 %v30
  %v42 = vpack.c.b16 %v41, %v40
  %vm44 = vcmask 130048
  %v46 = vsel %vm44, %v28, 0
  %48 = vmatprep.subr.bf16.mxu0 0
  %49 = vmatpush1.bf16.msra.mxu0 0
  %50 = vmatprep.subr.bf16.mxu0 0
  %51 = vmatpush1.bf16.msra.mxu0 0
  %52 = vmatprep.subr.bf16.mxu0 0
  %53 = vmatpush1.bf16.msra.mxu0 0
  %54 = vmatprep.subr.bf16.mxu0 0
  %55 = vmatpush1.bf16.msra.mxu0 0
  %56 = vmatprep.subr.bf16.mxu0 0
  %57 = vmatpush1.bf16.msra.mxu0 0
  %58 = vmatprep.subr.bf16.mxu0 0
  %59 = vmatpush1.bf16.msra.mxu0 0
  %60 = vmatprep.subr.bf16.mxu0 0
  %61 = vmatpush1.bf16.msra.mxu0 0
  %62 = vmatprep.subr.bf16.mxu0 0
  %63 = vmatpush1.bf16.msra.mxu0 %v42
  %64 = vmatprep.subr.bf16.mxu0 0
  %65 = vmatpush2.bf16.msra.mxu0 0
  %66 = vmatprep.subr.bf16.mxu0 0
  %67 = vmatpush2.bf16.msra.mxu0 0
  %68 = vmatprep.subr.bf16.mxu0 0
  %69 = vmatpush2.bf16.msra.mxu0 0
  %70 = vmatprep.subr.bf16.mxu0 0
  %71 = vmatpush2.bf16.msra.mxu0 0
  %72 = vmatprep.subr.bf16.mxu0 0
  %73 = vmatpush2.bf16.msra.mxu0 0
  %74 = vmatprep.subr.bf16.mxu0 0
  %75 = vmatpush2.bf16.msra.mxu0 0
  %76 = vmatprep.subr.bf16.mxu0 0
  %77 = vmatpush2.bf16.msra.mxu0 0
  %78 = vmatprep.subr.bf16.mxu0 0
  %79 = vmatpush2.bf16.msra.mxu0 0
  %80 = vmatprep.mubr.bf16.mxu0 0
  %81 = vmatmul.mubr.bf16.gmra.mxu0 %v46
  %v82 = vpop.f32.mrf.mxu0
  %v83 = vadd.f32 %v36, %v82
  %v84 = vpop.f32.mrf.mxu0
  %v85 = vpop.f32.mrf.mxu0
  %v86 = vpop.f32.mrf.mxu0
  %87 = vdwg.mxu0
  %v88 = vmax.f32 %v83, 0.0
  %v89 = vpack.c.bf16 %v88, %v88
  %v90 = vld [vmem:[%s2] sm:$0xf]
  %v91 = vld [vmem:[%s2 + $0x4] sm:$0xf]
  %v92 = vld [vmem:[%s5] sm:$0x1]
  %v94 = vlaneseq
  %v95 = vshrl.u32 %v94, 7
  %v96 = vsub.s32 0, %v95
  %v97 = vrot.slane %v92, %v96
  %v101 = vunpack.c.l.b16 %v90
  %v102 = vunpack.c.l.b16 %v91
  %v103 = vpack.c.b16 %v102, %v101
  %v106 = vsel %vm44, %v89, 0
  %108 = vmatprep.subr.bf16.mxu0 0
  %109 = vmatpush1.bf16.msra.mxu0 0
  %110 = vmatprep.subr.bf16.mxu0 0
  %111 = vmatpush1.bf16.msra.mxu0 0
  %112 = vmatprep.subr.bf16.mxu0 0
  %113 = vmatpush1.bf16.msra.mxu0 0
  %114 = vmatprep.subr.bf16.mxu0 0
  %115 = vmatpush1.bf16.msra.mxu0 0
  %116 = vmatprep.subr.bf16.mxu0 0
  %117 = vmatpush1.bf16.msra.mxu0 0
  %118 = vmatprep.subr.bf16.mxu0 0
  %119 = vmatpush1.bf16.msra.mxu0 0
  %120 = vmatprep.subr.bf16.mxu0 0
  %121 = vmatpush1.bf16.msra.mxu0 0
  %122 = vmatprep.subr.bf16.mxu0 0
  %123 = vmatpush1.bf16.msra.mxu0 %v103
  %124 = vmatprep.subr.bf16.mxu0 0
  %125 = vmatpush2.bf16.msra.mxu0 0
  %126 = vmatprep.subr.bf16.mxu0 0
  %127 = vmatpush2.bf16.msra.mxu0 0
  %128 = vmatprep.subr.bf16.mxu0 0
  %129 = vmatpush2.bf16.msra.mxu0 0
  %130 = vmatprep.subr.bf16.mxu0 0
  %131 = vmatpush2.bf16.msra.mxu0 0
  %132 = vmatprep.subr.bf16.mxu0 0
  %133 = vmatpush2.bf16.msra.mxu0 0
  %134 = vmatprep.subr.bf16.mxu0 0
  %135 = vmatpush2.bf16.msra.mxu0 0
  %136 = vmatprep.subr.bf16.mxu0 0
  %137 = vmatpush2.bf16.msra.mxu0 0
  %138 = vmatprep.subr.bf16.mxu0 0
  %139 = vmatpush2.bf16.msra.mxu0 0
  %140 = vmatprep.mubr.bf16.mxu0 0
  %141 = vmatmul.mubr.bf16.gmra.mxu0 %v106
  %v142 = vpop.f32.mrf.mxu0
  %v143 = vadd.f32 %v97, %v142
  %v144 = vpop.f32.mrf.mxu0
  %v145 = vpop.f32.mrf.mxu0
  %v146 = vpop.f32.mrf.mxu0
  %147 = vdwg.mxu0
  %v148 = vmax.f32 %v143, 0.0
  %v149 = vpack.c.bf16 %v148, %v148
  %v150 = vld [vmem:[%s3] sm:$0xf]
  %v151 = vld [vmem:[%s3 + $0x4] sm:$0xf]
  %v152 = vld [vmem:[%s3 + $0x8] sm:$0xf]
  %v153 = vld [vmem:[%s3 + $0xc] sm:$0xf]
  %v154 = vld [vmem:[%s6] sm:$0x1]
  %v156 = vlaneseq
  %v157 = vshrl.u32 %v156, 7
  %v158 = vsub.s32 0, %v157
  %v159 = vrot.slane %v154, %v158
  %v165 = vunpack.c.l.b16 %v150
  %v166 = vunpack.c.l.b16 %v151
  %v167 = vunpack.c.l.b16 %v152
  %v168 = vunpack.c.l.b16 %v153
  %v169 = vpack.c.b16 %v166, %v165
  %v170 = vpack.c.b16 %v168, %v167
  %vm173 = vcmask 261120
  %v175 = vsel %vm173, %v149, 0
  %177 = vmatprep.subr.bf16.mxu0 0
  %178 = vmatpush1.bf16.msra.mxu0 0
  %179 = vmatprep.subr.bf16.mxu0 0
  %180 = vmatpush1.bf16.msra.mxu0 0
  %181 = vmatprep.subr.bf16.mxu0 0
  %182 = vmatpush1.bf16.msra.mxu0 0
  %183 = vmatprep.subr.bf16.mxu0 0
  %184 = vmatpush1.bf16.msra.mxu0 0
  %185 = vmatprep.subr.bf16.mxu0 0
  %186 = vmatpush1.bf16.msra.mxu0 0
  %187 = vmatprep.subr.bf16.mxu0 0
  %188 = vmatpush1.bf16.msra.mxu0 0
  %189 = vmatprep.subr.bf16.mxu0 0
  %190 = vmatpush1.bf16.msra.mxu0 %v170
  %191 = vmatprep.subr.bf16.mxu0 0
  %192 = vmatpush1.bf16.msra.mxu0 %v169
  %193 = vmatprep.subr.bf16.mxu0 0
  %194 = vmatpush2.bf16.msra.mxu0 0
  %195 = vmatprep.subr.bf16.mxu0 0
  %196 = vmatpush2.bf16.msra.mxu0 0
  %197 = vmatprep.subr.bf16.mxu0 0
  %198 = vmatpush2.bf16.msra.mxu0 0
  %199 = vmatprep.subr.bf16.mxu0 0
  %200 = vmatpush2.bf16.msra.mxu0 0
  %201 = vmatprep.subr.bf16.mxu0 0
  %202 = vmatpush2.bf16.msra.mxu0 0
  %203 = vmatprep.subr.bf16.mxu0 0
  %204 = vmatpush2.bf16.msra.mxu0 0
  %205 = vmatprep.subr.bf16.mxu0 0
  %206 = vmatpush2.bf16.msra.mxu0 0
  %207 = vmatprep.subr.bf16.mxu0 0
  %208 = vmatpush2.bf16.msra.mxu0 0
  %209 = vmatprep.mubr.bf16.mxu0 0
  %210 = vmatmul.mubr.bf16.gmra.mxu0 %v175
  %v211 = vpop.f32.mrf.mxu0
  %v212 = vadd.f32 %v159, %v211
  %v213 = vpop.f32.mrf.mxu0
  %v214 = vpop.f32.mrf.mxu0
  %v215 = vpop.f32.mrf.mxu0
  %216 = vdwg.mxu0
  %vm217 = vcmask 64512
  %218 = vst.msk [vmem:[%s7] sm:$0xff] %vm217, %v212
  // Predicated region
  $region30: #{net_forward.1} parent=0 // pred_check
    _
  $region31: #{net_forward.1} parent=0 // pred_check_branch
    %220 = sbr.rel (0) target = $region33
  $region32: #{net_forward.1} parent=0 // pred_region
    _
  $region33: #{net_forward.1} parent=0 // pred_fallthru
    _
  // Predicated region
  $region34: #{net_forward.1} parent=0 // pred_check
    _
  $region35: #{net_forward.1} parent=0 // pred_check_branch
    %222 = sbr.rel (0) target = $region37
  $region36: #{net_forward.1} parent=0 // pred_region
    _
  $region37: #{net_forward.1} parent=0 // pred_fallthru
    _

</llo_original>
